<compile_context>
chip_gen: v5e
topology: v5e:2x2
jax: 0.10.0
libtpu: 0.0.40
codegen_flags: <defaults>
</compile_context>

<pallas_src>
import math

import jax
import jax.numpy as jnp
from jax.experimental import pallas as pl
from jax.experimental.pallas import tpu as pltpu


def siamese_kernel(e1_ref, e2_ref,
                   w1c_ref, w1l_ref, b1_ref, g1_ref, be1_ref,
                   w2_ref, b2_ref, g2_ref, be2_ref,
                   w3_ref, b3_ref,
                   out_ref):
    f32 = jnp.float32
    bf16 = jnp.bfloat16
    e1 = e1_ref[...].astype(f32)                  # (TB, E)
    e2 = e2_ref[...].astype(f32)                  # (TB, E)

    # ---- cosine similarity along dim=1 (PyTorch: dot / max(|a|*|b|, eps)) ----
    eps = 1e-8
    dot = jnp.sum(e1 * e2, axis=-1, keepdims=True)                # (TB, 1)
    n1sq = jnp.sum(e1 * e1, axis=-1, keepdims=True)               # (TB, 1)
    n2sq = jnp.sum(e2 * e2, axis=-1, keepdims=True)               # (TB, 1)
    cos = dot / jnp.maximum(jnp.sqrt(n1sq) * jnp.sqrt(n2sq), eps)  # (TB, 1)

    # ---- L1 distance ----
    l1 = jnp.abs(e1 - e2)                                         # (TB, E)

    # combined = concat([cos, l1], dim=1) @ W1^T + b1, implemented without a
    # concat: the first column of W1 acts on cos (VPU broadcast-mul), the rest
    # act on l1 (bf16 MXU matmul, f32 accumulation).
    h = (cos * w1c_ref[...]
         + jnp.dot(l1.astype(bf16), w1l_ref[...], preferred_element_type=f32)
         + b1_ref[...])                                           # (TB, H)

    # ---- LayerNorm(H) (eps=1e-5), single-pass moments in f32, ReLU ----
    mu = jnp.mean(h, axis=-1, keepdims=True)
    ex2 = jnp.mean(h * h, axis=-1, keepdims=True)
    var = jnp.maximum(ex2 - mu * mu, 0.0)
    h = (h - mu) * jax.lax.rsqrt(var + 1e-5) * g1_ref[...] + be1_ref[...]
    h = jnp.maximum(h, 0.0)
    # Dropout: identity (inference)

    # ---- Linear(H -> H//2), bf16 MXU operands, f32 accumulation ----
    h2 = (jnp.dot(h.astype(bf16), w2_ref[...], preferred_element_type=f32)
          + b2_ref[...])                                          # (TB, H/2)

    # ---- LayerNorm(H//2), ReLU ----
    mu2 = jnp.mean(h2, axis=-1, keepdims=True)
    ex22 = jnp.mean(h2 * h2, axis=-1, keepdims=True)
    var2 = jnp.maximum(ex22 - mu2 * mu2, 0.0)
    h2 = (h2 - mu2) * jax.lax.rsqrt(var2 + 1e-5) * g2_ref[...] + be2_ref[...]
    h2 = jnp.maximum(h2, 0.0)
    # Dropout: identity (inference)

    # ---- Linear(H//2 -> 1) as VPU mul + lane reduce (skip N=1 MXU matmul), Sigmoid
    logit = jnp.sum(h2 * w3_ref[...], axis=-1, keepdims=True) + b3_ref[...]  # (TB,1)
    out_ref[...] = jax.nn.sigmoid(logit).astype(out_ref.dtype)


def siamese_forward(emb1, emb2, params, *, tb=512):
    """Batch-tiled Pallas forward. emb1/emb2: (B, E) float32."""
    B, E = emb1.shape
    H = params["b1"].shape[-1]
    half = params["b2"].shape[-1]

    # Tile size: up to `tb` rows per grid step (multiple-of-8 friendly); the
    # per-buffer VMEM cost is TB*E*4 bytes x 2 inputs x 2 pipeline buffers,
    # which at tb=512 stays a few MiB even for E ~ 1024.
    TB = min(tb, B)
    n_steps = pl.cdiv(B, TB)
    Bp = n_steps * TB
    e1, e2 = emb1, emb2
    if Bp != B:
        pad = Bp - B
        e1 = jnp.pad(e1, ((0, pad), (0, 0)))
        e2 = jnp.pad(e2, ((0, pad), (0, 0)))

    weights = (params["w1_cos"], params["w1_l1"], params["b1"],
               params["g1"], params["be1"],
               params["w2"], params["b2"], params["g2"], params["be2"],
               params["w3_row"], params["b3"])
    args = (e1, e2) + weights

    # Streamed batch tiles for the embeddings; constant-index (VMEM-resident)
    # full blocks for every weight/bias.
    batch_spec = pl.BlockSpec((TB, E), lambda i: (i, 0))
    weight_specs = [pl.BlockSpec(w.shape, lambda i: (0, 0)) for w in weights]
    in_specs = [batch_spec, batch_spec] + weight_specs
    out_spec = pl.BlockSpec((TB, 1), lambda i: (i, 0))

    weight_bytes = sum(int(math.prod(w.shape)) * w.dtype.itemsize for w in weights)
    cost = pl.CostEstimate(
        flops=2 * Bp * E * H + 2 * Bp * H * half + 12 * Bp * E + 12 * Bp * H,
        transcendentals=5 * Bp,  # sqrt x2, rsqrt x2, sigmoid per row
        bytes_accessed=2 * Bp * E * 4 + weight_bytes + Bp * 4,
    )

    out = pl.pallas_call(
        siamese_kernel,
        out_shape=jax.ShapeDtypeStruct((Bp, 1), jnp.float32),
        grid=(n_steps,),
        in_specs=in_specs,
        out_specs=out_spec,
        compiler_params=pltpu.CompilerParams(
            dimension_semantics=("parallel",),       # megacore split on v7x
            vmem_limit_bytes=48 * 1024 * 1024,       # headroom for v7x's 64 MiB VMEM
        ),
        cost_estimate=cost,
    )(*args)

    return out[:B] if Bp != B else out


def xavier_uniform(key, out_dim, in_dim):
    # nn.init.xavier_uniform_ on a (out, in) weight, gain=1
    bound = (6.0 / (in_dim + out_dim)) ** 0.5
    return jax.random.uniform(key, (out_dim, in_dim), jnp.float32, -bound, bound)


def init_params(key, embedding_dim, hidden_dim):
    input_dim = embedding_dim + 1
    half = hidden_dim // 2
    k1, k2, k3 = jax.random.split(key, 3)

    W1 = xavier_uniform(k1, hidden_dim, input_dim)   # (H, E+1)
    W2 = xavier_uniform(k2, half, hidden_dim)        # (H/2, H)
    W3 = xavier_uniform(k3, 1, half)                 # (1, H/2)

    W1t = W1.T                                       # (E+1, H)
    return {
        # first input column corresponds to cos_sim, rest to l1_dist
        "w1_cos": W1t[0:1, :],                              # (1, H)  f32 (VPU path)
        "w1_l1": W1t[1:, :].astype(jnp.bfloat16),           # (E, H)  bf16 MXU operand
        "b1": jnp.zeros((1, hidden_dim), jnp.float32),
        "g1": jnp.ones((1, hidden_dim), jnp.float32),
        "be1": jnp.zeros((1, hidden_dim), jnp.float32),
        "w2": W2.T.astype(jnp.bfloat16),                    # (H, H/2) bf16 MXU operand
        "b2": jnp.zeros((1, half), jnp.float32),
        "g2": jnp.ones((1, half), jnp.float32),
        "be2": jnp.zeros((1, half), jnp.float32),
        "w3_row": W3,                                       # (1, H/2) f32 (VPU path)
        "b3": jnp.zeros((1, 1), jnp.float32),
    }


def reference_forward(emb1, emb2, params):
    # Pure-JAX reference mirroring the kernel's numerics (bf16 MXU operands,
    # f32 accumulation), PyTorch cosine eps semantics, eval-mode dropout.
    f32 = jnp.float32
    bf16 = jnp.bfloat16
    eps = 1e-8
    dot = jnp.sum(emb1 * emb2, axis=-1, keepdims=True)
    n1 = jnp.linalg.norm(emb1, axis=-1, keepdims=True)
    n2 = jnp.linalg.norm(emb2, axis=-1, keepdims=True)
    cos = dot / jnp.maximum(n1 * n2, eps)
    l1 = jnp.abs(emb1 - emb2)
    h = (cos * params["w1_cos"]
         + jnp.dot(l1.astype(bf16), params["w1_l1"], preferred_element_type=f32)
         + params["b1"])
    mu = h.mean(-1, keepdims=True)
    var = ((h - mu) ** 2).mean(-1, keepdims=True)
    h = (h - mu) / jnp.sqrt(var + 1e-5) * params["g1"] + params["be1"]
    h = jnp.maximum(h, 0.0)
    h2 = (jnp.dot(h.astype(bf16), params["w2"], preferred_element_type=f32)
          + params["b2"])
    mu2 = h2.mean(-1, keepdims=True)
    var2 = ((h2 - mu2) ** 2).mean(-1, keepdims=True)
    h2 = (h2 - mu2) / jnp.sqrt(var2 + 1e-5) * params["g2"] + params["be2"]
    h2 = jnp.maximum(h2, 0.0)
    logit = jnp.sum(h2 * params["w3_row"], axis=-1, keepdims=True) + params["b3"]
    return jax.nn.sigmoid(logit)


if __name__ == "__main__":
    B, EMB_DIM, HIDDEN = 8, 32, 32

    key = jax.random.PRNGKey(0)
    k_p, k_a, k_b = jax.random.split(key, 3)
    params = init_params(k_p, EMB_DIM, HIDDEN)

    emb1 = jax.random.normal(k_a, (B, EMB_DIM), jnp.float32)
    emb2 = jax.random.normal(k_b, (B, EMB_DIM), jnp.float32)

    out = siamese_forward(emb1, emb2, params)
    jax.block_until_ready(out)

    ref = reference_forward(emb1, emb2, params)
    assert out.shape == (B, 1)
    assert jnp.allclose(out, ref, atol=1e-3, rtol=1e-3), (
        f"max abs diff {jnp.max(jnp.abs(out - ref))}")

    print("KERNEL_OK")
</pallas_src>

<mosaic_0001>
module attributes {stable_mosaic.version = 11 : i64} {
  func.func @siamese_kernel(%arg0: i32, %arg1: memref<8x32xf32, #tpu.memory_space<vmem>>, %arg2: memref<8x32xf32, #tpu.memory_space<vmem>>, %arg3: memref<1x32xf32, #tpu.memory_space<vmem>>, %arg4: memref<32x32xbf16, #tpu.memory_space<vmem>>, %arg5: memref<1x32xf32, #tpu.memory_space<vmem>>, %arg6: memref<1x32xf32, #tpu.memory_space<vmem>>, %arg7: memref<1x32xf32, #tpu.memory_space<vmem>>, %arg8: memref<32x16xbf16, #tpu.memory_space<vmem>>, %arg9: memref<1x16xf32, #tpu.memory_space<vmem>>, %arg10: memref<1x16xf32, #tpu.memory_space<vmem>>, %arg11: memref<1x16xf32, #tpu.memory_space<vmem>>, %arg12: memref<1x16xf32, #tpu.memory_space<vmem>>, %arg13: memref<1x1xf32, #tpu.memory_space<vmem>>, %arg14: memref<8x1xf32, #tpu.memory_space<vmem>>) attributes {dimension_semantics = [#tpu.dimension_semantics<parallel>], iteration_bounds = array<i64: 1>, scalar_prefetch = 0 : i64, scratch_operands = 0 : i64, tpu.core_type = #tpu.core_type<tc>, window_params = [{transform_indices = @transform_0, window_bounds = array<i64: 8, 32>}, {transform_indices = @transform_1, window_bounds = array<i64: 8, 32>}, {pipeline_mode = #tpu.pipeline_mode<synchronous>, transform_indices = @transform_2, window_bounds = array<i64: 1, 32>}, {pipeline_mode = #tpu.pipeline_mode<synchronous>, transform_indices = @transform_3, window_bounds = array<i64: 32, 32>}, {pipeline_mode = #tpu.pipeline_mode<synchronous>, transform_indices = @transform_4, window_bounds = array<i64: 1, 32>}, {pipeline_mode = #tpu.pipeline_mode<synchronous>, transform_indices = @transform_5, window_bounds = array<i64: 1, 32>}, {pipeline_mode = #tpu.pipeline_mode<synchronous>, transform_indices = @transform_6, window_bounds = array<i64: 1, 32>}, {pipeline_mode = #tpu.pipeline_mode<synchronous>, transform_indices = @transform_7, window_bounds = array<i64: 32, 16>}, {pipeline_mode = #tpu.pipeline_mode<synchronous>, transform_indices = @transform_8, window_bounds = array<i64: 1, 16>}, {pipeline_mode = #tpu.pipeline_mode<synchronous>, transform_indices = @transform_9, window_bounds = array<i64: 1, 16>}, {pipeline_mode = #tpu.pipeline_mode<synchronous>, transform_indices = @transform_10, window_bounds = array<i64: 1, 16>}, {pipeline_mode = #tpu.pipeline_mode<synchronous>, transform_indices = @transform_11, window_bounds = array<i64: 1, 16>}, {pipeline_mode = #tpu.pipeline_mode<synchronous>, transform_indices = @transform_12, window_bounds = array<i64: 1, 1>}, {transform_indices = @transform_13, window_bounds = array<i64: 8, 1>}]} {
    %c0 = arith.constant 0 : index
    %c0_0 = arith.constant 0 : index
    %0 = vector.load %arg1[%c0, %c0_0] : memref<8x32xf32, #tpu.memory_space<vmem>>, vector<8x32xf32>
    %c0_1 = arith.constant 0 : index
    %c0_2 = arith.constant 0 : index
    %1 = vector.load %arg2[%c0_1, %c0_2] : memref<8x32xf32, #tpu.memory_space<vmem>>, vector<8x32xf32>
    %2 = arith.mulf %0, %1 : vector<8x32xf32>
    %cst = arith.constant dense<0.000000e+00> : vector<8xf32>
    %3 = vector.multi_reduction <add>, %2, %cst [1] : vector<8x32xf32> to vector<8xf32>
    %4 = vector.shape_cast %3 : vector<8xf32> to vector<8x1xf32>
    %5 = arith.mulf %0, %0 : vector<8x32xf32>
    %cst_3 = arith.constant dense<0.000000e+00> : vector<8xf32>
    %6 = vector.multi_reduction <add>, %5, %cst_3 [1] : vector<8x32xf32> to vector<8xf32>
    %7 = vector.shape_cast %6 : vector<8xf32> to vector<8x1xf32>
    %8 = arith.mulf %1, %1 : vector<8x32xf32>
    %cst_4 = arith.constant dense<0.000000e+00> : vector<8xf32>
    %9 = vector.multi_reduction <add>, %8, %cst_4 [1] : vector<8x32xf32> to vector<8xf32>
    %10 = vector.shape_cast %9 : vector<8xf32> to vector<8x1xf32>
    %11 = math.sqrt %7 : vector<8x1xf32>
    %12 = math.sqrt %10 : vector<8x1xf32>
    %13 = arith.mulf %11, %12 : vector<8x1xf32>
    %cst_5 = arith.constant 9.99999993E-9 : f32
    %14 = vector.broadcast %cst_5 : f32 to vector<8x1xf32>
    %15 = arith.maximumf %13, %14 : vector<8x1xf32>
    %16 = arith.divf %4, %15 : vector<8x1xf32>
    %17 = arith.subf %0, %1 : vector<8x32xf32>
    %18 = math.absf %17 : vector<8x32xf32>
    %c0_6 = arith.constant 0 : index
    %c0_7 = arith.constant 0 : index
    %19 = vector.load %arg3[%c0_6, %c0_7] : memref<1x32xf32, #tpu.memory_space<vmem>>, vector<1x32xf32>
    %20 = vector.broadcast %16 : vector<8x1xf32> to vector<8x32xf32>
    %21 = vector.broadcast %19 : vector<1x32xf32> to vector<8x32xf32>
    %22 = arith.mulf %20, %21 : vector<8x32xf32>
    %23 = arith.truncf %18 : vector<8x32xf32> to vector<8x32xbf16>
    %c0_8 = arith.constant 0 : index
    %c0_9 = arith.constant 0 : index
    %24 = vector.load %arg4[%c0_8, %c0_9] : memref<32x32xbf16, #tpu.memory_space<vmem>>, vector<32x32xbf16>
    %cst_10 = arith.constant dense<0.000000e+00> : vector<8x32xf32>
    %25 = tpu.matmul %23, %24, %cst_10 {dimension_numbers = #tpu.dot_dimension_numbers<[1], [0], [0], [1], [0, 0, 1, 1], [], []>} : vector<8x32xbf16>, vector<32x32xbf16>, vector<8x32xf32> -> vector<8x32xf32>
    %26 = arith.addf %22, %25 : vector<8x32xf32>
    %c0_11 = arith.constant 0 : index
    %c0_12 = arith.constant 0 : index
    %27 = vector.load %arg5[%c0_11, %c0_12] : memref<1x32xf32, #tpu.memory_space<vmem>>, vector<1x32xf32>
    %28 = vector.broadcast %27 : vector<1x32xf32> to vector<8x32xf32>
    %29 = arith.addf %26, %28 : vector<8x32xf32>
    %cst_13 = arith.constant dense<0.000000e+00> : vector<8xf32>
    %30 = vector.multi_reduction <add>, %29, %cst_13 [1] : vector<8x32xf32> to vector<8xf32>
    %31 = vector.shape_cast %30 : vector<8xf32> to vector<8x1xf32>
    %cst_14 = arith.constant 3.200000e+01 : f32
    %32 = vector.broadcast %cst_14 : f32 to vector<8x1xf32>
    %33 = arith.divf %31, %32 : vector<8x1xf32>
    %34 = arith.mulf %29, %29 : vector<8x32xf32>
    %cst_15 = arith.constant dense<0.000000e+00> : vector<8xf32>
    %35 = vector.multi_reduction <add>, %34, %cst_15 [1] : vector<8x32xf32> to vector<8xf32>
    %36 = vector.shape_cast %35 : vector<8xf32> to vector<8x1xf32>
    %cst_16 = arith.constant 3.200000e+01 : f32
    %37 = vector.broadcast %cst_16 : f32 to vector<8x1xf32>
    %38 = arith.divf %36, %37 : vector<8x1xf32>
    %39 = arith.mulf %33, %33 : vector<8x1xf32>
    %40 = arith.subf %38, %39 : vector<8x1xf32>
    %cst_17 = arith.constant 0.000000e+00 : f32
    %41 = vector.broadcast %cst_17 : f32 to vector<8x1xf32>
    %42 = arith.maximumf %40, %41 : vector<8x1xf32>
    %43 = vector.broadcast %33 : vector<8x1xf32> to vector<8x32xf32>
    %44 = arith.subf %29, %43 : vector<8x32xf32>
    %cst_18 = arith.constant 9.99999974E-6 : f32
    %45 = vector.broadcast %cst_18 : f32 to vector<8x1xf32>
    %46 = arith.addf %42, %45 : vector<8x1xf32>
    %47 = math.rsqrt %46 : vector<8x1xf32>
    %48 = vector.broadcast %47 : vector<8x1xf32> to vector<8x32xf32>
    %49 = arith.mulf %44, %48 : vector<8x32xf32>
    %c0_19 = arith.constant 0 : index
    %c0_20 = arith.constant 0 : index
    %50 = vector.load %arg6[%c0_19, %c0_20] : memref<1x32xf32, #tpu.memory_space<vmem>>, vector<1x32xf32>
    %51 = vector.broadcast %50 : vector<1x32xf32> to vector<8x32xf32>
    %52 = arith.mulf %49, %51 : vector<8x32xf32>
    %c0_21 = arith.constant 0 : index
    %c0_22 = arith.constant 0 : index
    %53 = vector.load %arg7[%c0_21, %c0_22] : memref<1x32xf32, #tpu.memory_space<vmem>>, vector<1x32xf32>
    %54 = vector.broadcast %53 : vector<1x32xf32> to vector<8x32xf32>
    %55 = arith.addf %52, %54 : vector<8x32xf32>
    %cst_23 = arith.constant 0.000000e+00 : f32
    %56 = vector.broadcast %cst_23 : f32 to vector<8x32xf32>
    %57 = arith.maximumf %55, %56 : vector<8x32xf32>
    %58 = arith.truncf %57 : vector<8x32xf32> to vector<8x32xbf16>
    %c0_24 = arith.constant 0 : index
    %c0_25 = arith.constant 0 : index
    %59 = vector.load %arg8[%c0_24, %c0_25] : memref<32x16xbf16, #tpu.memory_space<vmem>>, vector<32x16xbf16>
    %cst_26 = arith.constant dense<0.000000e+00> : vector<8x16xf32>
    %60 = tpu.matmul %58, %59, %cst_26 {dimension_numbers = #tpu.dot_dimension_numbers<[1], [0], [0], [1], [0, 0, 1, 1], [], []>} : vector<8x32xbf16>, vector<32x16xbf16>, vector<8x16xf32> -> vector<8x16xf32>
    %c0_27 = arith.constant 0 : index
    %c0_28 = arith.constant 0 : index
    %61 = vector.load %arg9[%c0_27, %c0_28] : memref<1x16xf32, #tpu.memory_space<vmem>>, vector<1x16xf32>
    %62 = vector.broadcast %61 : vector<1x16xf32> to vector<8x16xf32>
    %63 = arith.addf %60, %62 : vector<8x16xf32>
    %cst_29 = arith.constant dense<0.000000e+00> : vector<8xf32>
    %64 = vector.multi_reduction <add>, %63, %cst_29 [1] : vector<8x16xf32> to vector<8xf32>
    %65 = vector.shape_cast %64 : vector<8xf32> to vector<8x1xf32>
    %cst_30 = arith.constant 1.600000e+01 : f32
    %66 = vector.broadcast %cst_30 : f32 to vector<8x1xf32>
    %67 = arith.divf %65, %66 : vector<8x1xf32>
    %68 = arith.mulf %63, %63 : vector<8x16xf32>
    %cst_31 = arith.constant dense<0.000000e+00> : vector<8xf32>
    %69 = vector.multi_reduction <add>, %68, %cst_31 [1] : vector<8x16xf32> to vector<8xf32>
    %70 = vector.shape_cast %69 : vector<8xf32> to vector<8x1xf32>
    %cst_32 = arith.constant 1.600000e+01 : f32
    %71 = vector.broadcast %cst_32 : f32 to vector<8x1xf32>
    %72 = arith.divf %70, %71 : vector<8x1xf32>
    %73 = arith.mulf %67, %67 : vector<8x1xf32>
    %74 = arith.subf %72, %73 : vector<8x1xf32>
    %cst_33 = arith.constant 0.000000e+00 : f32
    %75 = vector.broadcast %cst_33 : f32 to vector<8x1xf32>
    %76 = arith.maximumf %74, %75 : vector<8x1xf32>
    %77 = vector.broadcast %67 : vector<8x1xf32> to vector<8x16xf32>
    %78 = arith.subf %63, %77 : vector<8x16xf32>
    %cst_34 = arith.constant 9.99999974E-6 : f32
    %79 = vector.broadcast %cst_34 : f32 to vector<8x1xf32>
    %80 = arith.addf %76, %79 : vector<8x1xf32>
    %81 = math.rsqrt %80 : vector<8x1xf32>
    %82 = vector.broadcast %81 : vector<8x1xf32> to vector<8x16xf32>
    %83 = arith.mulf %78, %82 : vector<8x16xf32>
    %c0_35 = arith.constant 0 : index
    %c0_36 = arith.constant 0 : index
    %84 = vector.load %arg10[%c0_35, %c0_36] : memref<1x16xf32, #tpu.memory_space<vmem>>, vector<1x16xf32>
    %85 = vector.broadcast %84 : vector<1x16xf32> to vector<8x16xf32>
    %86 = arith.mulf %83, %85 : vector<8x16xf32>
    %c0_37 = arith.constant 0 : index
    %c0_38 = arith.constant 0 : index
    %87 = vector.load %arg11[%c0_37, %c0_38] : memref<1x16xf32, #tpu.memory_space<vmem>>, vector<1x16xf32>
    %88 = vector.broadcast %87 : vector<1x16xf32> to vector<8x16xf32>
    %89 = arith.addf %86, %88 : vector<8x16xf32>
    %cst_39 = arith.constant 0.000000e+00 : f32
    %90 = vector.broadcast %cst_39 : f32 to vector<8x16xf32>
    %91 = arith.maximumf %89, %90 : vector<8x16xf32>
    %c0_40 = arith.constant 0 : index
    %c0_41 = arith.constant 0 : index
    %92 = vector.load %arg12[%c0_40, %c0_41] : memref<1x16xf32, #tpu.memory_space<vmem>>, vector<1x16xf32>
    %93 = vector.broadcast %92 : vector<1x16xf32> to vector<8x16xf32>
    %94 = arith.mulf %91, %93 : vector<8x16xf32>
    %cst_42 = arith.constant dense<0.000000e+00> : vector<8xf32>
    %95 = vector.multi_reduction <add>, %94, %cst_42 [1] : vector<8x16xf32> to vector<8xf32>
    %96 = vector.shape_cast %95 : vector<8xf32> to vector<8x1xf32>
    %c0_43 = arith.constant 0 : index
    %c0_44 = arith.constant 0 : index
    %97 = vector.load %arg13[%c0_43, %c0_44] : memref<1x1xf32, #tpu.memory_space<vmem>>, vector<1x1xf32>
    %98 = vector.broadcast %97 : vector<1x1xf32> to vector<8x1xf32>
    %99 = arith.addf %96, %98 : vector<8x1xf32>
    %100 = arith.negf %99 : vector<8x1xf32>
    %101 = math.exp %100 : vector<8x1xf32>
    %cst_45 = arith.constant 1.000000e+00 : f32
    %102 = vector.broadcast %cst_45 : f32 to vector<8x1xf32>
    %103 = arith.addf %102, %101 : vector<8x1xf32>
    %104 = arith.divf %102, %103 : vector<8x1xf32>
    %c0_46 = arith.constant 0 : index
    %c0_47 = arith.constant 0 : index
    %105 = vector.load %arg14[%c0_46, %c0_47] : memref<8x1xf32, #tpu.memory_space<vmem>>, vector<8x1xf32>
    tpu.vector_store %arg14[%c0_46, %c0_47], %104 {strides = array<i32>} : memref<8x1xf32, #tpu.memory_space<vmem>>, vector<8x1xf32>,
    return
  }
  func.func @transform_0(%arg0: i32) -> (i32, i32) {
    %c0_i32 = arith.constant 0 : i32
    %c0_i32_0 = arith.constant 0 : i32
    return %arg0, %c0_i32 : i32, i32
  }
  func.func @transform_1(%arg0: i32) -> (i32, i32) {
    %c0_i32 = arith.constant 0 : i32
    %c0_i32_0 = arith.constant 0 : i32
    return %arg0, %c0_i32 : i32, i32
  }
  func.func @transform_2(%arg0: i32) -> (i32, i32) {
    %c0_i32 = arith.constant 0 : i32
    %c0_i32_0 = arith.constant 0 : i32
    %c0_i32_1 = arith.constant 0 : i32
    return %c0_i32, %c0_i32_0 : i32, i32
  }
  func.func @transform_3(%arg0: i32) -> (i32, i32) {
    %c0_i32 = arith.constant 0 : i32
    %c0_i32_0 = arith.constant 0 : i32
    %c0_i32_1 = arith.constant 0 : i32
    return %c0_i32, %c0_i32_0 : i32, i32
  }
  func.func @transform_4(%arg0: i32) -> (i32, i32) {
    %c0_i32 = arith.constant 0 : i32
    %c0_i32_0 = arith.constant 0 : i32
    %c0_i32_1 = arith.constant 0 : i32
    return %c0_i32, %c0_i32_0 : i32, i32
  }
  func.func @transform_5(%arg0: i32) -> (i32, i32) {
    %c0_i32 = arith.constant 0 : i32
    %c0_i32_0 = arith.constant 0 : i32
    %c0_i32_1 = arith.constant 0 : i32
    return %c0_i32, %c0_i32_0 : i32, i32
  }
  func.func @transform_6(%arg0: i32) -> (i32, i32) {
    %c0_i32 = arith.constant 0 : i32
    %c0_i32_0 = arith.constant 0 : i32
    %c0_i32_1 = arith.constant 0 : i32
    return %c0_i32, %c0_i32_0 : i32, i32
  }
  func.func @transform_7(%arg0: i32) -> (i32, i32) {
    %c0_i32 = arith.constant 0 : i32
    %c0_i32_0 = arith.constant 0 : i32
    %c0_i32_1 = arith.constant 0 : i32
    return %c0_i32, %c0_i32_0 : i32, i32
  }
  func.func @transform_8(%arg0: i32) -> (i32, i32) {
    %c0_i32 = arith.constant 0 : i32
    %c0_i32_0 = arith.constant 0 : i32
    %c0_i32_1 = arith.constant 0 : i32
    return %c0_i32, %c0_i32_0 : i32, i32
  }
  func.func @transform_9(%arg0: i32) -> (i32, i32) {
    %c0_i32 = arith.constant 0 : i32
    %c0_i32_0 = arith.constant 0 : i32
    %c0_i32_1 = arith.constant 0 : i32
    return %c0_i32, %c0_i32_0 : i32, i32
  }
  func.func @transform_10(%arg0: i32) -> (i32, i32) {
    %c0_i32 = arith.constant 0 : i32
    %c0_i32_0 = arith.constant 0 : i32
    %c0_i32_1 = arith.constant 0 : i32
    return %c0_i32, %c0_i32_0 : i32, i32
  }
  func.func @transform_11(%arg0: i32) -> (i32, i32) {
    %c0_i32 = arith.constant 0 : i32
    %c0_i32_0 = arith.constant 0 : i32
    %c0_i32_1 = arith.constant 0 : i32
    return %c0_i32, %c0_i32_0 : i32, i32
  }
  func.func @transform_12(%arg0: i32) -> (i32, i32) {
    %c0_i32 = arith.constant 0 : i32
    %c0_i32_0 = arith.constant 0 : i32
    %c0_i32_1 = arith.constant 0 : i32
    return %c0_i32, %c0_i32_0 : i32, i32
  }
  func.func @transform_13(%arg0: i32) -> (i32, i32) {
    %c0_i32 = arith.constant 0 : i32
    %c0_i32_0 = arith.constant 0 : i32
    return %arg0, %c0_i32 : i32, i32
  }
}

</mosaic_0001>

<llo_original>
// kernel: tpu_custom_call.1
$region0: #{tpu_custom_call.1}
  #allocation0 [shape = 'u32[]', space=smem, size = 0x4, offset = 0x4, fixed_abs, tag = 'smem constant byte address 0x4 - core index']
  #allocation1 [shape = 'u32[72,128]{1,0:T(1,128)}', space=vmem, size = 0x9000, scoped, tag = 'internal scratch']
  #allocation2 [shape = 'f32[1,1]{1,0:T(1,128)S(1)}', space=vmem, size = 0x200, scoped, tag = 'scoped memory for tpu_custom_call.1']
  %s0 = inlined_call_operand.vmem [shape: f32[8,32], index: 0, kind: input, shape index: {}]
  %s1 = inlined_call_operand.hbm [shape: f32[8,32], index: 1, kind: input, shape index: {}]
  %s2 = inlined_call_operand.hbm [shape: f32[1,32], index: 2, kind: input, shape index: {}]
  %s3 = inlined_call_operand.vmem [shape: bf16[32,32], index: 3, kind: input, shape index: {}]
  %s4 = inlined_call_operand.hbm [shape: f32[1,32], index: 4, kind: input, shape index: {}]
  %s5 = inlined_call_operand.hbm [shape: f32[1,32], index: 5, kind: input, shape index: {}]
  %s6 = inlined_call_operand.hbm [shape: f32[1,32], index: 6, kind: input, shape index: {}]
  %s7 = inlined_call_operand.vmem [shape: bf16[32,16], index: 7, kind: input, shape index: {}]
  %s8 = inlined_call_operand.vmem [shape: f32[1,16], index: 8, kind: input, shape index: {}]
  %s9 = inlined_call_operand.vmem [shape: f32[1,16], index: 9, kind: input, shape index: {}]
  %s10 = inlined_call_operand.vmem [shape: f32[1,16], index: 10, kind: input, shape index: {}]
  %s11 = inlined_call_operand.vmem [shape: f32[1,16], index: 11, kind: input, shape index: {}]
  %s12 = inlined_call_operand.<no memory space> [shape: f32[1,1], index: 12, kind: input, shape index: {}]
  %s13 = inlined_call_operand.vmem [shape: f32[8,1], index: 13, kind: output, shape index: {}]
  %s14 = sld [smem:[#allocation0]]
  $region82: #{tpu_custom_call.1} parent=0
    _
  %s16 = ssub.s32 1, %s14
  %s17 = scalar_select 0, %s16, %s14
  %v18 = vstv %s12
  %19 = vst [vmem:[#allocation2] sm:$0x1] %v18
  $region1: #{tpu_custom_call.1} parent=0
    #allocation3 [shape = 'u8[4096]{0}', space=vmem, size = 0x1000, scoped, tag = 'input window, operand 1, single buffered']
    #allocation4 [shape = 's32[1]{0}', space=sflag, size = 0x4, scoped, tag = 'scoped memory for tpu_custom_call.1']
    #allocation5 [shape = 'u8[512]{0}', space=vmem, size = 0x400, scoped, tag = 'input window, operand 2, single buffered']
    #allocation6 [shape = 's32[1]{0}', space=sflag, size = 0x4, scoped, tag = 'scoped memory for tpu_custom_call.1']
    #allocation7 [shape = 'u8[512]{0}', space=vmem, size = 0x400, scoped, tag = 'input window, operand 4, single buffered']
    #allocation8 [shape = 'u8[512]{0}', space=vmem, size = 0x400, scoped, tag = 'input window, operand 5, single buffered']
    #allocation9 [shape = 's32[1]{0}', space=sflag, size = 0x4, scoped, tag = 'scoped memory for tpu_custom_call.1']
    #allocation10 [shape = 'u8[512]{0}', space=vmem, size = 0x400, scoped, tag = 'input window, operand 6, single buffered']
    %20 = vsyncpa [#allocation4], 0
    %21 = vsyncpa [#allocation6], 0
    %22 = vsyncpa [#allocation9], 0
    // Predicated region
    $region2: #{tpu_custom_call.1} parent=1 // pred_check
      _
    $region3: #{tpu_custom_call.1} parent=1 // pred_check_branch
      %24 = sbr.rel (0) target = $region5
    $region4: #{tpu_custom_call.1} parent=1 // pred_region
      _
    $region5: #{tpu_custom_call.1} parent=1 // pred_fallthru
      _
    // Predicated region
    $region6: #{tpu_custom_call.1} parent=1 // pred_check
      _
    $region7: #{tpu_custom_call.1} parent=1 // pred_check_branch
      %26 = sbr.rel (0) target = $region9
    $region8: #{tpu_custom_call.1} parent=1 // pred_region
      %28 = vsyncadd [#allocation4], 0
      %s30 = sshll.u32 %s1, 4
      %s31 = int_to_ptr.hbm [resolvable:$true] %s30
      %s32 = sshll.u32 [#allocation3], 4
      %s33 = int_to_ptr.vmem [resolvable:$true] %s32
      %35 = dma.hbm_to_vmem [thread:$0]  %s31, 128, %s33, [#allocation4]
    $region9: #{tpu_custom_call.1} parent=1 // pred_fallthru
      _
    // Predicated region
    $region10: #{tpu_custom_call.1} parent=1 // pred_check
      _
    $region11: #{tpu_custom_call.1} parent=1 // pred_check_branch
      %37 = sbr.rel (0) target = $region13
    $region12: #{tpu_custom_call.1} parent=1 // pred_region
      %39 = vsyncadd [#allocation6], 0
      %s41 = sshll.u32 %s2, 4
      %s42 = int_to_ptr.hbm [resolvable:$true] %s41
      %s43 = sshll.u32 [#allocation5], 4
      %s44 = int_to_ptr.vmem [resolvable:$true] %s43
      %46 = dma.hbm_to_vmem [thread:$0]  %s42, 16, %s44, [#allocation6]
    $region13: #{tpu_custom_call.1} parent=1 // pred_fallthru
      _
    // Predicated region
    $region14: #{tpu_custom_call.1} parent=1 // pred_check
      _
    $region15: #{tpu_custom_call.1} parent=1 // pred_check_branch
      %48 = sbr.rel (0) target = $region17
    $region16: #{tpu_custom_call.1} parent=1 // pred_region
      _
    $region17: #{tpu_custom_call.1} parent=1 // pred_fallthru
      _
    // Predicated region
    $region18: #{tpu_custom_call.1} parent=1 // pred_check
      _
    $region19: #{tpu_custom_call.1} parent=1 // pred_check_branch
      %50 = sbr.rel (0) target = $region21
    $region20: #{tpu_custom_call.1} parent=1 // pred_region
      %52 = vsyncadd [#allocation6], 0
      %s54 = sshll.u32 %s4, 4
      %s55 = int_to_ptr.hbm [resolvable:$true] %s54
      %s56 = sshll.u32 [#allocation7], 4
      %s57 = int_to_ptr.vmem [resolvable:$true] %s56
      %59 = dma.hbm_to_vmem [thread:$0]  %s55, 16, %s57, [#allocation6]
    $region21: #{tpu_custom_call.1} parent=1 // pred_fallthru
      _
    // Predicated region
    $region22: #{tpu_custom_call.1} parent=1 // pred_check
      _
    $region23: #{tpu_custom_call.1} parent=1 // pred_check_branch
      %61 = sbr.rel (0) target = $region25
    $region24: #{tpu_custom_call.1} parent=1 // pred_region
      %63 = vsyncadd [#allocation9], 0
      %s65 = sshll.u32 %s5, 4
      %s66 = int_to_ptr.hbm [resolvable:$true] %s65
      %s67 = sshll.u32 [#allocation8], 4
      %s68 = int_to_ptr.vmem [resolvable:$true] %s67
      %70 = dma.hbm_to_vmem [thread:$0]  %s66, 16, %s68, [#allocation9]
    $region25: #{tpu_custom_call.1} parent=1 // pred_fallthru
      _
    // Predicated region
    $region26: #{tpu_custom_call.1} parent=1 // pred_check
      _
    $region27: #{tpu_custom_call.1} parent=1 // pred_check_branch
      %72 = sbr.rel (0) target = $region29
    $region28: #{tpu_custom_call.1} parent=1 // pred_region
      %74 = vsyncadd [#allocation9], 0
      %s76 = sshll.u32 %s6, 4
      %s77 = int_to_ptr.hbm [resolvable:$true] %s76
      %s78 = sshll.u32 [#allocation10], 4
      %s79 = int_to_ptr.vmem [resolvable:$true] %s78
      %81 = dma.hbm_to_vmem [thread:$0]  %s77, 16, %s79, [#allocation9]
    $region29: #{tpu_custom_call.1} parent=1 // pred_fallthru
      _
    // Predicated region
    $region30: #{tpu_custom_call.1} parent=1 // pred_check
      _
    $region31: #{tpu_custom_call.1} parent=1 // pred_check_branch
      %83 = sbr.rel (0) target = $region33
    $region32: #{tpu_custom_call.1} parent=1 // pred_region
      _
    $region33: #{tpu_custom_call.1} parent=1 // pred_fallthru
      _
    // Predicated region
    $region34: #{tpu_custom_call.1} parent=1 // pred_check
      _
    $region35: #{tpu_custom_call.1} parent=1 // pred_check_branch
      %85 = sbr.rel (0) target = $region37
    $region36: #{tpu_custom_call.1} parent=1 // pred_region
      _
    $region37: #{tpu_custom_call.1} parent=1 // pred_fallthru
      _
    // Predicated region
    $region38: #{tpu_custom_call.1} parent=1 // pred_check
      _
    $region39: #{tpu_custom_call.1} parent=1 // pred_check_branch
      %87 = sbr.rel (0) target = $region41
    $region40: #{tpu_custom_call.1} parent=1 // pred_region
      _
    $region41: #{tpu_custom_call.1} parent=1 // pred_fallthru
      _
    // Predicated region
    $region42: #{tpu_custom_call.1} parent=1 // pred_check
      _
    $region43: #{tpu_custom_call.1} parent=1 // pred_check_branch
      %89 = sbr.rel (0) target = $region45
    $region44: #{tpu_custom_call.1} parent=1 // pred_region
      _
    $region45: #{tpu_custom_call.1} parent=1 // pred_fallthru
      _
    // Predicated region
    $region46: #{tpu_custom_call.1} parent=1 // pred_check
      _
    $region47: #{tpu_custom_call.1} parent=1 // pred_check_branch
      %91 = sbr.rel (0) target = $region49
    $region48: #{tpu_custom_call.1} parent=1 // pred_region
      _
    $region49: #{tpu_custom_call.1} parent=1 // pred_fallthru
      _
    // Predicated region
    $region50: #{tpu_custom_call.1} parent=1 // pred_check
      _
    $region51: #{tpu_custom_call.1} parent=1 // pred_check_branch
      %93 = sbr.rel (0) target = $region53
    $region52: #{tpu_custom_call.1} parent=1 // pred_region
      _
    $region53: #{tpu_custom_call.1} parent=1 // pred_fallthru
      _
    // Predicated region
    $region54: #{tpu_custom_call.1} parent=1 // pred_check
      _
    $region55: #{tpu_custom_call.1} parent=1 // pred_check_branch
      %95 = sbr.rel (0) target = $region57
    $region56: #{tpu_custom_call.1} parent=1 // pred_region
      %97 = dma.done [#allocation4], 128
    $region57: #{tpu_custom_call.1} parent=1 // pred_fallthru
      _
    // Predicated region
    $region58: #{tpu_custom_call.1} parent=1 // pred_check
      _
    $region59: #{tpu_custom_call.1} parent=1 // pred_check_branch
      %99 = sbr.rel (0) target = $region61
    $region60: #{tpu_custom_call.1} parent=1 // pred_region
      %101 = dma.done [#allocation6], 16
    $region61: #{tpu_custom_call.1} parent=1 // pred_fallthru
      _
    // Predicated region
    $region62: #{tpu_custom_call.1} parent=1 // pred_check
      _
    $region63: #{tpu_custom_call.1} parent=1 // pred_check_branch
      %103 = sbr.rel (0) target = $region65
    $region64: #{tpu_custom_call.1} parent=1 // pred_region
      %105 = dma.done [#allocation6], 16
    $region65: #{tpu_custom_call.1} parent=1 // pred_fallthru
      _
    // Predicated region
    $region66: #{tpu_custom_call.1} parent=1 // pred_check
      _
    $region67: #{tpu_custom_call.1} parent=1 // pred_check_branch
      %107 = sbr.rel (0) target = $region69
    $region68: #{tpu_custom_call.1} parent=1 // pred_region
      %109 = dma.done [#allocation9], 16
    $region69: #{tpu_custom_call.1} parent=1 // pred_fallthru
      _
    // Predicated region
    $region70: #{tpu_custom_call.1} parent=1 // pred_check
      _
    $region71: #{tpu_custom_call.1} parent=1 // pred_check_branch
      %111 = sbr.rel (0) target = $region73
    $region72: #{tpu_custom_call.1} parent=1 // pred_region
      %113 = dma.done [#allocation9], 16
    $region73: #{tpu_custom_call.1} parent=1 // pred_fallthru
      _
    %v115 = vld [vmem:[%s0] sm:$0xff]
    %v116 = vld [vmem:[#allocation3] sm:$0xff]
    %v117 = vmul.f32 %v115, %v116
    %vm118 = vcmask 261120
    %v119 = vsel %vm118, %v117, 0.0
    %120 = vadd.xlane.f32.xlu0 %v119
    %v121 = vpop.xlane.xlu0 %120
    %v122 = vmul.f32 %v115, %v115
    %v123 = vsel %vm118, %v122, 0.0
    %124 = vadd.xlane.f32.xlu0 %v123
    %v125 = vpop.xlane.xlu0 %124
    %v126 = vmul.f32 %v116, %v116
    %v127 = vsel %vm118, %v126, 0.0
    %128 = vadd.xlane.f32.xlu0 %v127
    %v129 = vpop.xlane.xlu0 %128
    %v130 = vrsqrt.pop %v125
    %v131 = vmul.f32 %v130, %v125
    %v132 = vmul.f32 %v131, %v130
    %v133 = vmul.f32 0.5, %v132
    %v134 = vsub.f32 1.5, %v133
    %v135 = vmul.f32 %v130, %v134
    %v136 = vmul.f32 %v125, %v135
    %vm137 = vcmp.eq.f32.partialorder %v125, inf
    %v138 = vsel %vm137, %v125, %v136
    %vm139 = vcmp.eq.f32.partialorder %v125, 0.0
    %v140 = vand.u32 %v125, 2147483648
    %v141 = vsel %vm139, %v140, %v138
    %v142 = vrsqrt.pop %v129
    %v143 = vmul.f32 %v142, %v129
    %v144 = vmul.f32 %v143, %v142
    %v145 = vmul.f32 0.5, %v144
    %v146 = vsub.f32 1.5, %v145
    %v147 = vmul.f32 %v142, %v146
    %v148 = vmul.f32 %v129, %v147
    %vm149 = vcmp.eq.f32.partialorder %v129, inf
    %v150 = vsel %vm149, %v129, %v148
    %vm151 = vcmp.eq.f32.partialorder %v129, 0.0
    %v152 = vand.u32 %v129, 2147483648
    %v153 = vsel %vm151, %v152, %v150
    %v154 = vmul.f32 %v141, %v153
    %v155 = vmax.f32 %v154, 1e-08
    %v156 = vrcp.pop %v155
    %v157 = vmul.f32 %v155, %v156
    %v158 = vsub.f32 1.0, %v157
    %v159 = vmul.f32 %v156, %v158
    %v160 = vadd.f32 %v156, %v159
    %vm161 = vweird.f32 %v155
    %vm162 = vweird.f32 %v156
    %vm163 = vmor %vm161, %vm162
    %v164 = vsel %vm163, %v156, %v160
    %v165 = vand.u32 2147483647, %v155
    %vm166 = vcmp.eq.f32.partialorder %v165, 8.507059e+37
    %v167 = vand.u32 %v155, 2147483648
    %v168 = vor.u32 1.1754944e-38, %v167
    %v169 = vsel %vm166, %v168, %v164
    %v170 = vmul.f32 %v121, %v169
    %v171 = vsub.f32 %v115, %v116
    %v172 = vand.u32 2147483647, %v171
    %v173 = vld [vmem:[#allocation5] sm:$0x1]
    %v175 = vperm.slane %v173, 0
    %v177 = vmul.f32 %v170, %v175
    %v178 = vpack.c.bf16 %v172, %v172
    %v179 = vld [vmem:[%s3] sm:$0xf]
    %v180 = vld [vmem:[%s3 + $0x4] sm:$0xf]
    %v181 = vld [vmem:[%s3 + $0x8] sm:$0xf]
    %v182 = vld [vmem:[%s3 + $0xc] sm:$0xf]
    %v187 = vunpack.c.l.b16 %v179
    %v188 = vunpack.c.l.b16 %v180
    %v189 = vunpack.c.l.b16 %v181
    %v190 = vunpack.c.l.b16 %v182
    %v191 = vpack.c.b16 %v188, %v187
    %v192 = vpack.c.b16 %v190, %v189
    %v196 = vsel %vm118, %v178, 0
    %198 = vmatpush.bf16.msra.mxu0 0
    %199 = vmatpush.bf16.msra.mxu0 0
    %200 = vmatpush.bf16.msra.mxu0 0
    %201 = vmatpush.bf16.msra.mxu0 0
    %202 = vmatpush.bf16.msra.mxu0 0
    %203 = vmatpush.bf16.msra.mxu0 0
    %204 = vmatpush.bf16.msra.mxu0 %v192
    %205 = vmatpush.bf16.msra.mxu0 %v191
    %206 = vmatmul.bf16.gmra.mxu0 %v196
    %v207 = vpop.f32.mrf.mxu0
    %v208 = vadd.f32 0.0, %v207
    %v209 = vpop.f32.mrf.mxu0
    %210 = vdwg.mxu0
    %v211 = vadd.f32 %v177, %v208
    %v212 = vld [vmem:[#allocation7] sm:$0x1]
    %v214 = vperm.slane %v212, 0
    %v216 = vadd.f32 %v211, %v214
    %v217 = vsel %vm118, %v216, 0.0
    %218 = vadd.xlane.f32.xlu0 %v217
    %v219 = vpop.xlane.xlu0 %218
    %v220 = vrcp.pop 32.0
    %v221 = vmul.f32 32.0, %v220
    %v222 = vsub.f32 1.0, %v221
    %v223 = vmul.f32 %v220, %v222
    %v224 = vadd.f32 %v220, %v223
    %vm225 = vweird.f32 %v220
    %v226 = vsel %vm225, %v220, %v224
    %v227 = vmul.f32 %v219, %v226
    %v228 = vmul.f32 %v216, %v216
    %v229 = vsel %vm118, %v228, 0.0
    %230 = vadd.xlane.f32.xlu0 %v229
    %v231 = vpop.xlane.xlu0 %230
    %v232 = vmul.f32 %v231, %v226
    %v233 = vmul.f32 %v227, %v227
    %v234 = vsub.f32 %v232, %v233
    %v235 = vmax.f32 %v234, 0.0
    %v236 = vsub.f32 %v216, %v227
    %v237 = vadd.f32 %v235, 1e-05
    %v238 = vrsqrt.pop %v237
    %v239 = vmul.f32 %v238, %v237
    %v240 = vmul.f32 %v239, %v238
    %v241 = vmul.f32 0.5, %v240
    %v242 = vsub.f32 1.5, %v241
    %v243 = vmul.f32 %v238, %v242
    %vm244 = vweird.f32 %v237
    %vm245 = vweird.f32 %v238
    %vm246 = vmor %vm244, %vm245
    %v247 = vsel %vm246, %v238, %v243
    %v248 = vmul.f32 %v236, %v247
    %v249 = vld [vmem:[#allocation8] sm:$0x1]
    %v251 = vperm.slane %v249, 0
    %v253 = vmul.f32 %v248, %v251
    %v254 = vld [vmem:[#allocation10] sm:$0x1]
    %v256 = vperm.slane %v254, 0
    %v258 = vadd.f32 %v253, %v256
    %v259 = vmax.f32 %v258, 0.0
    %v260 = vpack.c.bf16 %v259, %v259
    %v261 = vld [vmem:[%s7] sm:$0xf]
    %v262 = vld [vmem:[%s7 + $0x4] sm:$0xf]
    %v263 = vld [vmem:[%s7 + $0x8] sm:$0xf]
    %v264 = vld [vmem:[%s7 + $0xc] sm:$0xf]
    %v265 = vld [vmem:[%s8] sm:$0x1]
    %v267 = vperm.slane %v265, 0
    %v273 = vunpack.c.l.b16 %v261
    %v274 = vunpack.c.l.b16 %v262
    %v275 = vunpack.c.l.b16 %v263
    %v276 = vunpack.c.l.b16 %v264
    %v277 = vpack.c.b16 %v274, %v273
    %v278 = vpack.c.b16 %v276, %v275
    %v282 = vsel %vm118, %v260, 0
    %284 = vmatpush.bf16.msra.mxu0 0
    %285 = vmatpush.bf16.msra.mxu0 0
    %286 = vmatpush.bf16.msra.mxu0 0
    %287 = vmatpush.bf16.msra.mxu0 0
    %288 = vmatpush.bf16.msra.mxu0 0
    %289 = vmatpush.bf16.msra.mxu0 0
    %290 = vmatpush.bf16.msra.mxu0 %v278
    %291 = vmatpush.bf16.msra.mxu0 %v277
    %292 = vmatmul.bf16.gmra.mxu0 %v282
    %v293 = vpop.f32.mrf.mxu0
    %v294 = vadd.f32 %v267, %v293
    %v295 = vpop.f32.mrf.mxu0
    %296 = vdwg.mxu0
    %vm297 = vcmask 130048
    %v298 = vsel %vm297, %v294, 0.0
    %299 = vadd.xlane.f32.xlu0 %v298
    %v300 = vpop.xlane.xlu0 %299
    %v301 = vrcp.pop 16.0
    %v302 = vmul.f32 16.0, %v301
    %v303 = vsub.f32 1.0, %v302
    %v304 = vmul.f32 %v301, %v303
    %v305 = vadd.f32 %v301, %v304
    %vm306 = vweird.f32 %v301
    %v307 = vsel %vm306, %v301, %v305
    %v308 = vmul.f32 %v300, %v307
    %v309 = vmul.f32 %v294, %v294
    %v310 = vsel %vm297, %v309, 0.0
    %311 = vadd.xlane.f32.xlu0 %v310
    %v312 = vpop.xlane.xlu0 %311
    %v313 = vmul.f32 %v312, %v307
    %v314 = vmul.f32 %v308, %v308
    %v315 = vsub.f32 %v313, %v314
    %v316 = vmax.f32 %v315, 0.0
    %v317 = vsub.f32 %v294, %v308
    %v318 = vadd.f32 %v316, 1e-05
    %v319 = vrsqrt.pop %v318
    %v320 = vmul.f32 %v319, %v318
    %v321 = vmul.f32 %v320, %v319
    %v322 = vmul.f32 0.5, %v321
    %v323 = vsub.f32 1.5, %v322
    %v324 = vmul.f32 %v319, %v323
    %vm325 = vweird.f32 %v318
    %vm326 = vweird.f32 %v319
    %vm327 = vmor %vm325, %vm326
    %v328 = vsel %vm327, %v319, %v324
    %v329 = vmul.f32 %v317, %v328
    %v330 = vld [vmem:[%s9] sm:$0x1]
    %v332 = vperm.slane %v330, 0
    %v334 = vmul.f32 %v329, %v332
    %v335 = vld [vmem:[%s10] sm:$0x1]
    %v337 = vperm.slane %v335, 0
    %v339 = vadd.f32 %v334, %v337
    %v340 = vmax.f32 %v339, 0.0
    %v341 = vld [vmem:[%s11] sm:$0x1]
    %v343 = vperm.slane %v341, 0
    %v345 = vmul.f32 %v340, %v343
    %v346 = vsel %vm297, %v345, 0.0
    %347 = vadd.xlane.f32.xlu0 %v346
    %v348 = vpop.xlane.xlu0 %347
    %v349 = vld [vmem:[#allocation2] sm:$0x1]
    %v351 = vperm.slane %v349, 0
    %v353 = vadd.f32 %v348, %v351
    %v354 = vxor.u32 %v353, 2147483648
    %v355 = vmul.f32 %v354, 1.442695
    %v356 = vpow.pop %v355
    %v357 = vadd.f32 %v356, 1.0
    %v358 = vrcp.pop %v357
    %v359 = vmul.f32 %v357, %v358
    %v360 = vsub.f32 1.0, %v359
    %v361 = vmul.f32 %v358, %v360
    %v362 = vadd.f32 %v358, %v361
    %vm363 = vweird.f32 %v357
    %vm364 = vweird.f32 %v358
    %vm365 = vmor %vm363, %vm364
    %v366 = vsel %vm365, %v358, %v362
    %v367 = vand.u32 2147483647, %v357
    %vm368 = vcmp.eq.f32.partialorder %v367, 8.507059e+37
    %v369 = vand.u32 %v357, 2147483648
    %v370 = vor.u32 1.1754944e-38, %v369
    %v371 = vsel %vm368, %v370, %v366
    %v372 = vmul.f32 1.0, %v371
    %vm373 = vcmask 7168
    %374 = vst.msk [vmem:[%s13] sm:$0xff] %vm373, %v372
    // Predicated region
    $region74: #{tpu_custom_call.1} parent=1 // pred_check
      _
    $region75: #{tpu_custom_call.1} parent=1 // pred_check_branch
      %376 = sbr.rel (0) target = $region77
    $region76: #{tpu_custom_call.1} parent=1 // pred_region
      _
    $region77: #{tpu_custom_call.1} parent=1 // pred_fallthru
      _
    // Predicated region
    $region78: #{tpu_custom_call.1} parent=1 // pred_check
      _
    $region79: #{tpu_custom_call.1} parent=1 // pred_check_branch
      %378 = sbr.rel (0) target = $region81
    $region80: #{tpu_custom_call.1} parent=1 // pred_region
      _
    $region81: #{tpu_custom_call.1} parent=1 // pred_fallthru
      _
    %379 = vsyncpa [#allocation4], 1
    %380 = vsyncpa [#allocation6], 1
    %381 = vsyncpa [#allocation9], 1

</llo_original>
